<compile_context>
chip_gen: v6e
topology: v6e:2x2x1
jax: 0.10.0
libtpu: 0.0.40
codegen_flags: <defaults>
</compile_context>

<pallas_src>
import functools

import jax
import jax.numpy as jnp
from jax.experimental import pallas as pl
from jax.experimental.pallas import tpu as pltpu

LANES = 128            # vreg lane width
MAX_TILE_ROWS = 2048   # multiple of 32 (safe for f32/bf16/int8); 1 MiB f32 per tile


def _dice_partial_kernel(x_ref, t_ref, out_ref, *, tile_rows, total_rows):
    """One grid step: per-lane partial sums of sigmoid(x)*t, sigmoid(x), t."""
    x = x_ref[...].astype(jnp.float32)
    t = t_ref[...].astype(jnp.float32)
    s = jax.nn.sigmoid(x)

    if total_rows % tile_rows != 0:
        # Last tile is partial: rows past `total_rows` hold unspecified data
        # from the bounds-clipped DMA; zero them before reducing.
        row = (pl.program_id(0) * tile_rows
               + jax.lax.broadcasted_iota(jnp.int32, (tile_rows, LANES), 0))
        valid = row < total_rows
        s = jnp.where(valid, s, 0.0)
        t = jnp.where(valid, t, 0.0)

    # Sublane-only reductions; the cross-lane reduce is done once on the tiny
    # (nb, 3, 128) partials array in the jnp wrapper.
    out_ref[0, 0:1, :] = jnp.sum(s * t, axis=0, keepdims=True)  # intersection
    out_ref[0, 1:2, :] = jnp.sum(s, axis=0, keepdims=True)      # sum sigmoid(x)
    out_ref[0, 2:3, :] = jnp.sum(t, axis=0, keepdims=True)      # sum targets


def _dice_partials(x2, t2, rows):
    """Run the tiled kernel over [rows, 128] inputs -> (nb, 3, 128) partials."""
    tile_rows = rows if rows <= MAX_TILE_ROWS else MAX_TILE_ROWS
    nb = pl.cdiv(rows, tile_rows)
    return pl.pallas_call(
        functools.partial(_dice_partial_kernel,
                          tile_rows=tile_rows, total_rows=rows),
        out_shape=jax.ShapeDtypeStruct((nb, 3, LANES), jnp.float32),
        grid_spec=pltpu.PrefetchScalarGridSpec(
            num_scalar_prefetch=0,
            grid=(nb,),
            in_specs=[
                # NOTE: default double-buffering; pipeline_mode=pl.Buffered(3)
                # is an optional few-% tweak once tiles are large.
                pl.BlockSpec((tile_rows, LANES), lambda i: (i, 0)),
                pl.BlockSpec((tile_rows, LANES), lambda i: (i, 0)),
            ],
            out_specs=pl.BlockSpec((1, 3, LANES), lambda i: (i, 0, 0)),
        ),
        compiler_params=pltpu.CompilerParams(
            # Independent partial sums per tile -> megacore-shardable on v7x.
            dimension_semantics=("parallel",),
        ),
    )(x2, t2)


def dice_loss(inputs, targets, smooth=1.0):
    """Pallas implementation of DiceLoss.forward(inputs, targets, smooth)."""
    xf = inputs.reshape(-1)      # free reshape; keep storage dtype (no astype)
    tf = targets.reshape(-1)
    n = xf.shape[0]
    n_main = (n // LANES) * LANES

    inter = jnp.float32(0.0)
    s_in = jnp.float32(0.0)
    s_tg = jnp.float32(0.0)

    if n_main > 0:
        rows = n_main // LANES
        x2 = xf[:n_main].reshape(rows, LANES)   # no-op slice when n % 128 == 0
        t2 = tf[:n_main].reshape(rows, LANES)
        parts = _dice_partials(x2, t2, rows)    # (nb, 3, 128) f32
        inter = inter + jnp.sum(parts[:, 0, :])
        s_in = s_in + jnp.sum(parts[:, 1, :])
        s_tg = s_tg + jnp.sum(parts[:, 2, :])

    if n_main < n:
        # < 128 leftover elements: negligible work, plain jnp.
        xs = jax.nn.sigmoid(xf[n_main:].astype(jnp.float32))
        ts = tf[n_main:].astype(jnp.float32)
        inter = inter + jnp.sum(xs * ts)
        s_in = s_in + jnp.sum(xs)
        s_tg = s_tg + jnp.sum(ts)

    dice = (2.0 * inter + smooth) / (s_in + s_tg + smooth)
    return 1.0 - dice


def dice_loss_ref(inputs, targets, smooth=1.0):
    x = jax.nn.sigmoid(inputs.astype(jnp.float32)).reshape(-1)
    t = targets.astype(jnp.float32).reshape(-1)
    inter = jnp.sum(x * t)
    dice = (2.0 * inter + smooth) / (jnp.sum(x) + jnp.sum(t) + smooth)
    return 1.0 - dice


if __name__ == "__main__":
    key = jax.random.PRNGKey(0)
    k1, k2, k3, k4 = jax.random.split(key, 4)

    # Primary check: logits and binary targets, NCHW, small shape.
    inputs = jax.random.normal(k1, (2, 4, 16, 16), dtype=jnp.float32)
    targets = (jax.random.uniform(k2, (2, 4, 16, 16)) > 0.5).astype(jnp.float32)
    loss = jax.block_until_ready(dice_loss(inputs, targets, smooth=1.0))
    ref = jax.block_until_ready(dice_loss_ref(inputs, targets, smooth=1.0))
    assert jnp.allclose(loss, ref, rtol=1e-5, atol=1e-5), (loss, ref)

    # Second check: odd size exercising the masked partial last tile and the
    # sub-128-element jnp tail (numel = 360000 -> 2812 rows of 128 + 64 tail).
    inputs2 = jax.random.normal(k3, (1, 4, 300, 300), dtype=jnp.float32)
    targets2 = (jax.random.uniform(k4, (1, 4, 300, 300)) > 0.5).astype(jnp.float32)
    loss2 = jax.block_until_ready(dice_loss(inputs2, targets2, smooth=1.0))
    ref2 = jax.block_until_ready(dice_loss_ref(inputs2, targets2, smooth=1.0))
    assert jnp.allclose(loss2, ref2, rtol=1e-5, atol=1e-5), (loss2, ref2)

    print("KERNEL_OK")
</pallas_src>

<mosaic_0001>
module attributes {stable_mosaic.version = 11 : i64} {
  func.func @_dice_partial_kernel(%arg0: i32, %arg1: memref<16x128xf32, #tpu.memory_space<vmem>>, %arg2: memref<16x128xf32, #tpu.memory_space<vmem>>, %arg3: memref<1x3x128xf32, #tpu.memory_space<vmem>>) attributes {dimension_semantics = [#tpu.dimension_semantics<parallel>], iteration_bounds = array<i64: 1>, scalar_prefetch = 0 : i64, scratch_operands = 0 : i64, tpu.core_type = #tpu.core_type<tc>, window_params = [{transform_indices = @transform_0, window_bounds = array<i64: 16, 128>}, {transform_indices = @transform_1, window_bounds = array<i64: 16, 128>}, {transform_indices = @transform_2, window_bounds = array<i64: 1, 3, 128>}]} {
    %c0 = arith.constant 0 : index
    %c0_0 = arith.constant 0 : index
    %0 = vector.load %arg1[%c0, %c0_0] : memref<16x128xf32, #tpu.memory_space<vmem>>, vector<16x128xf32>
    %c0_1 = arith.constant 0 : index
    %c0_2 = arith.constant 0 : index
    %1 = vector.load %arg2[%c0_1, %c0_2] : memref<16x128xf32, #tpu.memory_space<vmem>>, vector<16x128xf32>
    %2 = arith.negf %0 : vector<16x128xf32>
    %3 = math.exp %2 : vector<16x128xf32>
    %cst = arith.constant 1.000000e+00 : f32
    %4 = vector.broadcast %cst : f32 to vector<16x128xf32>
    %5 = arith.addf %4, %3 : vector<16x128xf32>
    %6 = arith.divf %4, %5 : vector<16x128xf32>
    %7 = arith.mulf %6, %1 : vector<16x128xf32>
    %cst_3 = arith.constant dense<0.000000e+00> : vector<128xf32>
    %8 = vector.multi_reduction <add>, %7, %cst_3 [0] : vector<16x128xf32> to vector<128xf32>
    %9 = vector.shape_cast %8 : vector<128xf32> to vector<1x128xf32>
    %c0_4 = arith.constant 0 : index
    %c0_5 = arith.constant 0 : index
    %c0_6 = arith.constant 0 : index
    %10 = vector.load %arg3[%c0_4, %c0_5, %c0_6] : memref<1x3x128xf32, #tpu.memory_space<vmem>>, vector<1x1x128xf32>
    %11 = vector.shape_cast %10 : vector<1x1x128xf32> to vector<1x128xf32>
    %12 = vector.shape_cast %9 : vector<1x128xf32> to vector<1x1x128xf32>
    tpu.vector_store %arg3[%c0_4, %c0_5, %c0_6], %12 {strides = array<i32>} : memref<1x3x128xf32, #tpu.memory_space<vmem>>, vector<1x1x128xf32>,
    %cst_7 = arith.constant dense<0.000000e+00> : vector<128xf32>
    %13 = vector.multi_reduction <add>, %6, %cst_7 [0] : vector<16x128xf32> to vector<128xf32>
    %14 = vector.shape_cast %13 : vector<128xf32> to vector<1x128xf32>
    %c0_8 = arith.constant 0 : index
    %c1 = arith.constant 1 : index
    %c0_9 = arith.constant 0 : index
    %15 = vector.load %arg3[%c0_8, %c1, %c0_9] : memref<1x3x128xf32, #tpu.memory_space<vmem>>, vector<1x1x128xf32>
    %16 = vector.shape_cast %15 : vector<1x1x128xf32> to vector<1x128xf32>
    %17 = vector.shape_cast %14 : vector<1x128xf32> to vector<1x1x128xf32>
    tpu.vector_store %arg3[%c0_8, %c1, %c0_9], %17 {strides = array<i32>} : memref<1x3x128xf32, #tpu.memory_space<vmem>>, vector<1x1x128xf32>,
    %cst_10 = arith.constant dense<0.000000e+00> : vector<128xf32>
    %18 = vector.multi_reduction <add>, %1, %cst_10 [0] : vector<16x128xf32> to vector<128xf32>
    %19 = vector.shape_cast %18 : vector<128xf32> to vector<1x128xf32>
    %c0_11 = arith.constant 0 : index
    %c2 = arith.constant 2 : index
    %c0_12 = arith.constant 0 : index
    %20 = vector.load %arg3[%c0_11, %c2, %c0_12] : memref<1x3x128xf32, #tpu.memory_space<vmem>>, vector<1x1x128xf32>
    %21 = vector.shape_cast %20 : vector<1x1x128xf32> to vector<1x128xf32>
    %22 = vector.shape_cast %19 : vector<1x128xf32> to vector<1x1x128xf32>
    tpu.vector_store %arg3[%c0_11, %c2, %c0_12], %22 {strides = array<i32>} : memref<1x3x128xf32, #tpu.memory_space<vmem>>, vector<1x1x128xf32>,
    return
  }
  func.func @transform_0(%arg0: i32) -> (i32, i32) {
    %c0_i32 = arith.constant 0 : i32
    %c0_i32_0 = arith.constant 0 : i32
    return %arg0, %c0_i32 : i32, i32
  }
  func.func @transform_1(%arg0: i32) -> (i32, i32) {
    %c0_i32 = arith.constant 0 : i32
    %c0_i32_0 = arith.constant 0 : i32
    return %arg0, %c0_i32 : i32, i32
  }
  func.func @transform_2(%arg0: i32) -> (i32, i32, i32) {
    %c0_i32 = arith.constant 0 : i32
    %c0_i32_0 = arith.constant 0 : i32
    %c0_i32_1 = arith.constant 0 : i32
    return %arg0, %c0_i32, %c0_i32_0 : i32, i32, i32
  }
}

</mosaic_0001>

<llo_original>
// kernel: tpu_custom_call.1
$region0: #{tpu_custom_call.1}
  #allocation0 [shape = 'u32[]', space=smem, size = 0x4, offset = 0x4, fixed_abs, tag = 'smem constant byte address 0x4 - core index']
  #allocation1 [shape = 'u32[144,128]{1,0:T(1,128)}', space=vmem, size = 0x12000, scoped, tag = 'internal scratch']
  %s0 = inlined_call_operand.hbm [shape: f32[16,128], index: 0, kind: input, shape index: {}]
  %s1 = inlined_call_operand.hbm [shape: f32[16,128], index: 1, kind: input, shape index: {}]
  %s2 = inlined_call_operand.vmem [shape: f32[1,3,128], index: 2, kind: output, shape index: {}]
  %s3 = sld [smem:[#allocation0]]
  $region26: #{tpu_custom_call.1} parent=0
    _
  %s5 = ssub.s32 1, %s3
  %s6 = scalar_select 0, %s5, %s3
  $region1: #{tpu_custom_call.1} parent=0
    #allocation2 [shape = 'u8[8192]{0}', space=vmem, size = 0x2000, scoped, tag = 'input window, operand 0, single buffered']
    #allocation3 [shape = 's32[1]{0}', space=sflag, size = 0x4, scoped, tag = 'scoped memory for tpu_custom_call.1']
    #allocation4 [shape = 'u8[8192]{0}', space=vmem, size = 0x2000, scoped, tag = 'input window, operand 1, single buffered']
    #allocation5 [shape = 's32[1]{0}', space=sflag, size = 0x4, scoped, tag = 'scoped memory for tpu_custom_call.1']
    %7 = vsyncpa [#allocation3], 0
    %8 = vsyncpa [#allocation5], 0
    // Predicated region
    $region2: #{tpu_custom_call.1} parent=1 // pred_check
      _
    $region3: #{tpu_custom_call.1} parent=1 // pred_check_branch
      %10 = sbr.rel (0) target = $region5
    $region4: #{tpu_custom_call.1} parent=1 // pred_region
      %s12 = ssub.s32 256, 256
      %13 = vsyncadd [#allocation3], %s12
      %s14 = sshll.u32 [#allocation2], 4
      %s15 = int_to_ptr.vmem [resolvable:$true] %s14
      %20 = dma.hbm_to_vmem [thread:$0]  %s0, 256, %s15, [#allocation3], 128, 128, 8
    $region5: #{tpu_custom_call.1} parent=1 // pred_fallthru
      _
    // Predicated region
    $region6: #{tpu_custom_call.1} parent=1 // pred_check
      _
    $region7: #{tpu_custom_call.1} parent=1 // pred_check_branch
      %22 = sbr.rel (0) target = $region9
    $region8: #{tpu_custom_call.1} parent=1 // pred_region
      %s24 = ssub.s32 256, 256
      %25 = vsyncadd [#allocation5], %s24
      %s26 = sshll.u32 [#allocation4], 4
      %s27 = int_to_ptr.vmem [resolvable:$true] %s26
      %32 = dma.hbm_to_vmem [thread:$0]  %s1, 256, %s27, [#allocation5], 128, 128, 8
    $region9: #{tpu_custom_call.1} parent=1 // pred_fallthru
      _
    // Predicated region
    $region10: #{tpu_custom_call.1} parent=1 // pred_check
      _
    $region11: #{tpu_custom_call.1} parent=1 // pred_check_branch
      %34 = sbr.rel (0) target = $region13
    $region12: #{tpu_custom_call.1} parent=1 // pred_region
      %35 = dma.done [#allocation3], 256
    $region13: #{tpu_custom_call.1} parent=1 // pred_fallthru
      _
    // Predicated region
    $region14: #{tpu_custom_call.1} parent=1 // pred_check
      _
    $region15: #{tpu_custom_call.1} parent=1 // pred_check_branch
      %37 = sbr.rel (0) target = $region17
    $region16: #{tpu_custom_call.1} parent=1 // pred_region
      %38 = dma.done [#allocation5], 256
    $region17: #{tpu_custom_call.1} parent=1 // pred_fallthru
      _
    %v39 = vld [vmem:[#allocation2] sm:$0xff]
    %v40 = vld [vmem:[#allocation2 + $0x8] sm:$0xff]
    %v41 = vld [vmem:[#allocation4] sm:$0xff]
    %v42 = vld [vmem:[#allocation4 + $0x8] sm:$0xff]
    %v43 = vxor.u32 %v39, 2147483648
    %v44 = vxor.u32 %v40, 2147483648
    %v45 = vmul.f32 %v43, 1.442695
    %v46 = vpow.pop %v45
    %v47 = vmul.f32 %v44, 1.442695
    %v48 = vpow.pop %v47
    %v49 = vadd.f32 %v46, 1.0
    %v50 = vadd.f32 %v48, 1.0
    %v51 = vrcp.pop %v49
    %v52 = vmul.f32 1.0, %v51
    %v53 = vrcp.pop %v50
    %v54 = vmul.f32 1.0, %v53
    %v55 = vmul.f32 %v52, %v41
    %v56 = vmul.f32 %v54, %v42
    %v57 = vadd.f32 %v55, %v56
    %v58 = vrot.slane %v57, 4
    %v59 = vadd.f32 %v57, %v58
    %v60 = vrot.slane %v59, 2
    %v61 = vadd.f32 %v59, %v60
    %v62 = vrot.slane %v61, 1
    %v63 = vadd.f32 %v61, %v62
    %64 = vst [vmem:[%s2] sm:$0x1] %v63
    %v65 = vadd.f32 %v52, %v54
    %v66 = vrot.slane %v65, 4
    %v67 = vadd.f32 %v65, %v66
    %v68 = vrot.slane %v67, 2
    %v69 = vadd.f32 %v67, %v68
    %v70 = vrot.slane %v69, 1
    %v71 = vadd.f32 %v69, %v70
    %72 = vst [vmem:[%s2 + $0x1] sm:$0x1] %v71
    %v73 = vadd.f32 %v41, %v42
    %v74 = vrot.slane %v73, 4
    %v75 = vadd.f32 %v73, %v74
    %v76 = vrot.slane %v75, 2
    %v77 = vadd.f32 %v75, %v76
    %v78 = vrot.slane %v77, 1
    %v79 = vadd.f32 %v77, %v78
    %80 = vst [vmem:[%s2 + $0x2] sm:$0x1] %v79
    // Predicated region
    $region18: #{tpu_custom_call.1} parent=1 // pred_check
      _
    $region19: #{tpu_custom_call.1} parent=1 // pred_check_branch
      %82 = sbr.rel (0) target = $region21
    $region20: #{tpu_custom_call.1} parent=1 // pred_region
      _
    $region21: #{tpu_custom_call.1} parent=1 // pred_fallthru
      _
    // Predicated region
    $region22: #{tpu_custom_call.1} parent=1 // pred_check
      _
    $region23: #{tpu_custom_call.1} parent=1 // pred_check_branch
      %84 = sbr.rel (0) target = $region25
    $region24: #{tpu_custom_call.1} parent=1 // pred_region
      _
    $region25: #{tpu_custom_call.1} parent=1 // pred_fallthru
      _
    %85 = vsyncpa [#allocation3], 1
    %86 = vsyncpa [#allocation5], 1

</llo_original>
